<compile_context>
chip_gen: v7x
topology: tpu7x:2x2x1
jax: 0.10.0
libtpu: 0.0.40
codegen_flags: <defaults>
</compile_context>

<pallas_src>
import numpy as np
import jax
import jax.numpy as jnp
from jax.experimental import pallas as pl
from jax.experimental.pallas import tpu as pltpu


def _dma_copy_kernel(x_hbm, o_hbm, sem):
    # Pure HBM->HBM copy: one DMA descriptor, wait for completion.
    cp = pltpu.make_async_copy(x_hbm, o_hbm, sem)
    cp.start()
    cp.wait()


def _pallas_materializing_copy(x):
    """Materialize a distinct copy of `x` via a single HBM->HBM DMA."""
    itemsize = jnp.dtype(x.dtype).itemsize
    return pl.pallas_call(
        _dma_copy_kernel,
        out_shape=jax.ShapeDtypeStruct(x.shape, x.dtype),
        in_specs=[pl.BlockSpec(memory_space=pl.ANY)],
        out_specs=pl.BlockSpec(memory_space=pl.ANY),
        scratch_shapes=[pltpu.SemaphoreType.DMA(())],
        compiler_params=pltpu.CompilerParams(has_side_effects=True),
        cost_estimate=pl.CostEstimate(
            flops=0,
            transcendentals=0,
            bytes_accessed=2 * int(x.size) * itemsize,
        ),
    )(x)


def _resolve_shape(target_shape, numel):
    """Resolve a torch.view-style shape (may contain a single -1)."""
    shape = list(target_shape)
    if -1 in shape:
        idx = shape.index(-1)
        known = int(np.prod([s for s in shape if s != -1]))
        assert known != 0 and numel % known == 0, "invalid view shape"
        shape[idx] = numel // known
    assert int(np.prod(shape)) == numel, "view shape must preserve element count"
    return tuple(shape)


class Reshape:
    """JAX/Pallas equivalent of the PyTorch Reshape module."""

    def __init__(self, shape, force_materialize=False):
        self.shape = tuple(shape)
        self.force_materialize = force_materialize

    def __call__(self, x):
        numel = int(np.prod(x.shape))
        out_shape = _resolve_shape(self.shape, numel)

        # Metadata-only view/reshape: zero HBM traffic. This matches PyTorch
        # `view` semantics (no copy) and is the default (optimal) path.
        y = jnp.reshape(x, out_shape)

        if not self.force_materialize or numel == 0:
            return y

        # Explicitly materialize a fresh buffer with a single HBM->HBM DMA.
        # Works for any shape/dtype — no tiling, padding, or fallback needed.
        return _pallas_materializing_copy(y)


if __name__ == "__main__":
    key = jax.random.PRNGKey(0)
    # Small NCHW-style input consistent with CSVAE usage: (batch=2, C=4, H=16, W=16)
    x = jax.random.normal(key, (2, 4, 16, 16), dtype=jnp.float32)
    ref = jnp.reshape(x, (2, -1))

    # Default (fast) path: metadata-only reshape, no kernel launched.
    y_fast = Reshape((2, -1))(x)
    y_fast = jax.block_until_ready(y_fast)
    assert y_fast.shape == (2, 4 * 16 * 16)
    assert y_fast.dtype == x.dtype
    np.testing.assert_array_equal(np.asarray(y_fast), np.asarray(ref))

    # Explicit-materialization path: exercises the Pallas HBM->HBM DMA kernel.
    y_kern = Reshape((2, -1), force_materialize=True)(x)
    y_kern = jax.block_until_ready(y_kern)
    assert y_kern.shape == (2, 4 * 16 * 16)
    assert y_kern.dtype == x.dtype
    np.testing.assert_array_equal(np.asarray(y_kern), np.asarray(ref))

    # Awkward shape (rows = 8 * prime, bf16): previously fell back / degraded;
    # now handled by the same single-DMA path with full semantics.
    x2 = jax.random.normal(jax.random.PRNGKey(1), (2, 3, 7, 13), dtype=jnp.bfloat16)
    y2 = Reshape((-1,), force_materialize=True)(x2)
    y2 = jax.block_until_ready(y2)
    assert y2.shape == (2 * 3 * 7 * 13,)
    np.testing.assert_array_equal(np.asarray(y2), np.asarray(jnp.reshape(x2, (-1,))))

    print("KERNEL_OK")
</pallas_src>

<mosaic_0001>
module attributes {stable_mosaic.version = 11 : i64} {
  func.func @_dma_copy_kernel(%arg0: memref<2x1024xf32, #tpu.memory_space<any>>, %arg1: memref<2x1024xf32, #tpu.memory_space<any>>, %arg2: memref<!tpu.dma_semaphore, #tpu.memory_space<semaphore_mem>>) attributes {dimension_semantics = [], scalar_prefetch = 0 : i64, scratch_operands = 1 : i64, tpu.core_type = #tpu.core_type<tc>} {
    tpu.enqueue_dma source(%arg0 : memref<2x1024xf32, #tpu.memory_space<any>>) target(%arg1 : memref<2x1024xf32, #tpu.memory_space<any>>) target_semaphore(%arg2 : memref<!tpu.dma_semaphore, #tpu.memory_space<semaphore_mem>>)
    tpu.wait_dma2 semaphore(%arg2 : memref<!tpu.dma_semaphore, #tpu.memory_space<semaphore_mem>>) src(%arg0 : memref<2x1024xf32, #tpu.memory_space<any>>) dst(%arg1 : memref<2x1024xf32, #tpu.memory_space<any>>)
    return
  }
}

</mosaic_0001>

<llo_original>
// kernel: tpu_custom_call.1
$region0: #{tpu_custom_call.1}
  #allocation0 [shape = 'u32[]', space=smem, size = 0x4, offset = 0x4, fixed_abs, tag = 'smem constant byte address 0x4 - core index']
  #allocation1 [shape = 'u32[144,128]{1,0:T(1,128)}', space=vmem, size = 0x12000, scoped, tag = 'internal scratch']
  #allocation2 [shape = 's32[1]{0}', space=sflag, size = 0x4, scoped, tag = 'scratch operand']
  #allocation3 [shape = 's32[]', space=sflag, size = 0x4, offset = 0, fixed_abs, tag = 'sflag constant byte address 0x0 - dummy sync flag']
  #allocation4 [shape = 'u32[0]{0}', space=smem, size = 0, offset = 0, fixed_abs, tag = 'smem constant byte address 0x0 - null']
  %s0 = inlined_call_operand.hbm [shape: f32[2,1024], index: 0, kind: input, shape index: {}]
  %s1 = inlined_call_operand.hbm [shape: f32[2,1024], index: 1, kind: output, shape index: {}]
  %s2 = sld [smem:[#allocation0]]
  $region2: #{tpu_custom_call.1} parent=0
    _
  %s4 = ssub.s32 1, %s2
  %s5 = scalar_select 0, %s4, %s2
  %s7 = sshll.u32 1, 14
  %s8 = sxor.u32 4294967295, %s7
  %s11 = sshll.u32 3, 24
  %s12 = sxor.u32 4294967295, %s11
  %s13 = sand.u32 0, %s12
  %s15 = sor.u32 %s13, 0
  %18 = dma.general %s0, 256, %s1, [#allocation2], [#allocation3], [#allocation4], %s15, 0
  %s19 = smul.u32 2, 1
  %s20 = smul.u32 %s19, 8
  %s21 = sshll.u32 %s20, 4
  %22 = dma.done [#allocation2], %s21
  %23 = vsyncmov [#allocation2]
  %s24 = vpop.sfrf %23
  %p25 = scmp.eq.s32.totalorder %s24, 0
  %p26 = pneg %p25
  %28 = shalt.err (%p26)

</llo_original>
